<compile_context>
chip_gen: v7x
topology: tpu7x:2x2x1
jax: 0.10.0
libtpu: 0.0.40
codegen_flags: <defaults>
</compile_context>

<pallas_src>
import functools
import numpy as np

import jax
import jax.numpy as jnp
from jax import lax
from jax.experimental import pallas as pl
from jax.experimental.pallas import tpu as pltpu


# ----------------------------- Pallas kernel ------------------------------ #

def _antialias_kernel(x_ref, bt_ref, at_ref, o_ref):
    # x_ref : (CB, H, W)       input dtype
    # bt_ref: (W, Wo)   bf16   column blur + decimate, pre-transposed
    # at_ref: (H, Ho)   f32    row    blur + decimate, pre-transposed
    # o_ref : (1, CB, Ho*Wo)   lane-dense output slab
    cb, h, w = x_ref.shape
    wo = bt_ref.shape[1]
    ho = at_ref.shape[1]

    # W-blur + decimate: ONE fat MXU matmul, M = CB*H rows (fills the MXU and
    # amortizes per-step overhead over the whole channel block).
    x2 = x_ref[...].astype(jnp.bfloat16).reshape(cb * h, w)
    t = jnp.dot(x2, bt_ref[...], preferred_element_type=jnp.float32)     # (CB*H, Wo)

    # H-blur + decimate: also ONE fat MXU matmul, M = CB*Wo rows.  The
    # minor-dim transpose rides the otherwise-idle XLU slot; t stays f32 so the
    # whole pipeline has a single bf16 quantization (tighter numerics,
    # essentially free in the memory-bound regime).
    t = jnp.transpose(t.reshape(cb, h, wo), (0, 2, 1)).reshape(cb * wo, h)
    y = jnp.dot(t, at_ref[...], preferred_element_type=jnp.float32)      # (CB*Wo, Ho)

    # Re-layout to (CB, Ho*Wo) so the HBM store is lane-dense (no masked
    # vst.msk stores when Wo < 128).
    y = jnp.transpose(y.reshape(cb, wo, ho), (0, 2, 1)).reshape(cb, ho * wo)
    o_ref[...] = y.reshape(o_ref.shape).astype(o_ref.dtype)


# ----------------------- parameter / matrix setup (glue) ------------------ #

def _gaussian_1d(kernel_size, sigma):
    mean = (kernel_size - 1) / 2.0
    g = np.exp(-((np.arange(kernel_size, dtype=np.float64) - mean) ** 2)
               / (2.0 * sigma ** 2))
    # outer(g/sum, g/sum) == outer(g, g) / sum(outer(g, g))  (same sigma both axes)
    return (g / g.sum()).astype(np.float32)


def _blur_decimate_matrix(n_in, ka, kernel_size, stride, g1):
    # out[o] = sum_i g1[i] * x_padded[o*stride + i], x_padded has `ka` zeros on
    # the left  =>  M[o, h] = g1[h - stride*o + ka]  when in range, else 0.
    n_out = -(-n_in // stride)              # == len(range(n_in)[::stride])
    o = np.arange(n_out, dtype=np.int64)[:, None]
    h = np.arange(n_in, dtype=np.int64)[None, :]
    i = h - stride * o + ka
    valid = (i >= 0) & (i < kernel_size)
    m = np.where(valid, g1[np.clip(i, 0, kernel_size - 1)], np.float32(0.0))
    return m.astype(np.float32)


@functools.lru_cache(maxsize=None)
def _blur_decimate_matrices(h, w, scale):
    sigma = (1.0 / scale - 1.0) / 2.0
    kernel_size = 2 * round(sigma * 4) + 1
    ka = kernel_size // 2                   # kb == ka (kernel_size is odd)
    stride = int(1.0 / scale)               # mirrors PyTorch int() truncation
    g1 = _gaussian_1d(kernel_size, sigma)
    a = _blur_decimate_matrix(h, ka, kernel_size, stride, g1)        # (Ho, H)
    b = _blur_decimate_matrix(w, ka, kernel_size, stride, g1)        # (Wo, W)
    bt = np.ascontiguousarray(b.T)                                   # (W, Wo)
    at = np.ascontiguousarray(a.T)                                   # (H, Ho)
    # Bt in bf16 (first matmul operand), At in f32 (second matmul stays f32).
    return (jnp.asarray(bt, dtype=jnp.bfloat16),
            jnp.asarray(at, dtype=jnp.float32))


def _vmem_capacity_bytes():
    try:
        return int(pltpu.get_tpu_info().vmem_capacity_bytes)
    except Exception:
        return 64 * 1024 * 1024             # assume the smallest (v7x per-TC VMEM)


def _pick_channel_block(bc, h, w, ho, wo, itemsize, budget_bytes):
    """Biggest channel block whose per-step VMEM working set fits the budget."""
    per_channel = (
        2 * h * w * itemsize      # double-buffered input block (BlockSpec pipeline)
        + 2 * h * w               # bf16 copy of x for the first matmul
        + 4 * h * wo              # f32 intermediate t
        + 4 * h * wo              # relayout copy of t (H moved to last axis)
        + 3 * 4 * ho * wo         # f32 y + transpose + lane-dense relayout copies
        + 2 * ho * wo * itemsize  # double-buffered output block
    )
    cb = max(1, budget_bytes // per_channel)
    # Keep >= 2 grid steps whenever possible so the "parallel" grid axis can be
    # sharded across v7x's two TensorCores (harmless on single-TC v5e/v6e).
    cb = min(cb, max(1, (bc + 1) // 2))
    return int(min(cb, bc))


def anti_alias_interpolation2d(x, channels, scale):
    """Pallas implementation of AntiAliasInterpolation2d.forward (NCHW in/out)."""
    if scale == 1.0:
        return x

    B, C, H, W = x.shape
    assert C == channels
    stride = int(1.0 / scale)               # only exact for integer inverse scales
    Ho = -(-H // stride)
    Wo = -(-W // stride)

    Bt, At = _blur_decimate_matrices(H, W, float(scale))   # (W,Wo) bf16, (H,Ho) f32

    BC = B * C
    vmem_cap = _vmem_capacity_bytes()
    budget = min(24 << 20, vmem_cap // 3)                  # per-step working set target
    ab_bytes = 2 * (W * Wo * Bt.dtype.itemsize + H * Ho * At.dtype.itemsize)
    CB = _pick_channel_block(BC, H, W, Ho, Wo, x.dtype.itemsize,
                             max(budget - ab_bytes, 2 << 20))
    nsteps = -(-BC // CB)
    BCp = nsteps * CB                        # pad channels instead of shrinking CB

    x3 = x.reshape(BC, H, W)
    if BCp != BC:
        x3 = jnp.concatenate(
            [x3, jnp.zeros((BCp - BC, H, W), dtype=x3.dtype)], axis=0)

    flops = 2.0 * BCp * H * Wo * (W + Ho)
    bytes_accessed = (BCp * H * W * x3.dtype.itemsize
                      + At.size * At.dtype.itemsize + Bt.size * Bt.dtype.itemsize
                      + BCp * Ho * Wo * x3.dtype.itemsize)

    out = pl.pallas_call(
        _antialias_kernel,
        out_shape=jax.ShapeDtypeStruct((nsteps, CB, Ho * Wo), x.dtype),
        grid_spec=pltpu.PrefetchScalarGridSpec(
            num_scalar_prefetch=0,
            grid=(nsteps,),
            in_specs=[
                pl.BlockSpec((CB, H, W), lambda g: (g, 0, 0)),
                pl.BlockSpec((W, Wo), lambda g: (0, 0)),
                pl.BlockSpec((H, Ho), lambda g: (0, 0)),
            ],
            out_specs=pl.BlockSpec((1, CB, Ho * Wo), lambda g: (g, 0, 0)),
        ),
        compiler_params=pltpu.CompilerParams(
            dimension_semantics=("parallel",),
            vmem_limit_bytes=int(min(vmem_cap // 2, 48 << 20))),
        cost_estimate=pl.CostEstimate(
            flops=int(flops),
            transcendentals=0,
            bytes_accessed=int(bytes_accessed)),
    )(x3, Bt, At)

    out = out.reshape(BCp, Ho * Wo)          # free row-major reshape in HBM
    if BCp != BC:
        out = out[:BC]
    return out.reshape(B, C, Ho, Wo)


# ------------------------------ pure-JAX reference ------------------------ #

def _reference(x, channels, scale):
    if scale == 1.0:
        return x
    sigma = (1.0 / scale - 1.0) / 2.0
    kernel_size = 2 * round(sigma * 4) + 1
    ka = kernel_size // 2
    kb = ka
    s = int(1.0 / scale)
    g1 = _gaussian_1d(kernel_size, sigma)
    k2 = np.outer(g1, g1).astype(np.float32)
    w = np.tile(k2[None, None], (channels, 1, 1, 1)).astype(np.float32)  # (C, 1, K, K)
    out = lax.conv_general_dilated(
        x, jnp.asarray(w),
        window_strides=(1, 1),
        padding=((ka, kb), (ka, kb)),
        dimension_numbers=('NCHW', 'OIHW', 'NCHW'),
        feature_group_count=channels)
    return out[:, :, ::s, ::s]


# ----------------------------------- main ---------------------------------- #

if __name__ == "__main__":
    B, C, H, W = 2, 4, 16, 16
    scale = 0.5   # -> sigma=0.5, kernel_size=5, ka=kb=2, int_inv_scale=2, out 8x8

    key = jax.random.PRNGKey(0)
    x = jax.random.normal(key, (B, C, H, W), dtype=jnp.float32)

    out = anti_alias_interpolation2d(x, channels=C, scale=scale)
    out = jax.block_until_ready(out)

    ref = _reference(x, C, scale)
    assert out.shape == ref.shape == (B, C, H // 2, W // 2), (out.shape, ref.shape)
    # Single bf16 quantization (x + Bt), f32 accumulation and f32 second matmul
    # -> comfortably within this tolerance vs the f32 conv reference.
    np.testing.assert_allclose(np.asarray(out), np.asarray(ref), rtol=2e-2, atol=2e-2)

    print("KERNEL_OK")
</pallas_src>

<mosaic_0001>
module attributes {stable_mosaic.version = 11 : i64} {
  func.func @_antialias_kernel(%arg0: i32, %arg1: memref<4x16x16xf32, #tpu.memory_space<vmem>>, %arg2: memref<16x8xbf16, #tpu.memory_space<vmem>>, %arg3: memref<16x8xf32, #tpu.memory_space<vmem>>, %arg4: memref<1x4x64xf32, #tpu.memory_space<vmem>>) attributes {dimension_semantics = [#tpu.dimension_semantics<parallel>], iteration_bounds = array<i64: 2>, scalar_prefetch = 0 : i64, scratch_operands = 0 : i64, tpu.core_type = #tpu.core_type<tc>, window_params = [{transform_indices = @transform_0, window_bounds = array<i64: 4, 16, 16>}, {pipeline_mode = #tpu.pipeline_mode<synchronous>, transform_indices = @transform_1, window_bounds = array<i64: 16, 8>}, {pipeline_mode = #tpu.pipeline_mode<synchronous>, transform_indices = @transform_2, window_bounds = array<i64: 16, 8>}, {transform_indices = @transform_3, window_bounds = array<i64: 1, 4, 64>}]} {
    %c0 = arith.constant 0 : index
    %c0_0 = arith.constant 0 : index
    %c0_1 = arith.constant 0 : index
    %0 = vector.load %arg1[%c0, %c0_0, %c0_1] : memref<4x16x16xf32, #tpu.memory_space<vmem>>, vector<4x16x16xf32>
    %1 = arith.truncf %0 : vector<4x16x16xf32> to vector<4x16x16xbf16>
    %2 = vector.shape_cast %1 : vector<4x16x16xbf16> to vector<64x16xbf16>
    %c0_2 = arith.constant 0 : index
    %c0_3 = arith.constant 0 : index
    %3 = vector.load %arg2[%c0_2, %c0_3] : memref<16x8xbf16, #tpu.memory_space<vmem>>, vector<16x8xbf16>
    %cst = arith.constant dense<0.000000e+00> : vector<64x8xf32>
    %4 = tpu.matmul %2, %3, %cst {dimension_numbers = #tpu.dot_dimension_numbers<[1], [0], [0], [1], [0, 0, 1, 1], [], []>} : vector<64x16xbf16>, vector<16x8xbf16>, vector<64x8xf32> -> vector<64x8xf32>
    %5 = vector.shape_cast %4 : vector<64x8xf32> to vector<4x16x8xf32>
    %6 = tpu.transpose %5, [0, 2, 1] : vector<4x16x8xf32> -> vector<4x8x16xf32>
    %7 = vector.shape_cast %6 : vector<4x8x16xf32> to vector<32x16xf32>
    %c0_4 = arith.constant 0 : index
    %c0_5 = arith.constant 0 : index
    %8 = vector.load %arg3[%c0_4, %c0_5] : memref<16x8xf32, #tpu.memory_space<vmem>>, vector<16x8xf32>
    %cst_6 = arith.constant dense<0.000000e+00> : vector<32x8xf32>
    %9 = tpu.matmul %7, %8, %cst_6 {dimension_numbers = #tpu.dot_dimension_numbers<[1], [0], [0], [1], [0, 0, 1, 1], [], []>} : vector<32x16xf32>, vector<16x8xf32>, vector<32x8xf32> -> vector<32x8xf32>
    %10 = vector.shape_cast %9 : vector<32x8xf32> to vector<4x8x8xf32>
    %11 = tpu.transpose %10, [0, 2, 1] : vector<4x8x8xf32> -> vector<4x8x8xf32>
    %12 = vector.shape_cast %11 : vector<4x8x8xf32> to vector<4x64xf32>
    %13 = vector.shape_cast %12 : vector<4x64xf32> to vector<1x4x64xf32>
    %c0_7 = arith.constant 0 : index
    %c0_8 = arith.constant 0 : index
    %c0_9 = arith.constant 0 : index
    %14 = vector.load %arg4[%c0_7, %c0_8, %c0_9] : memref<1x4x64xf32, #tpu.memory_space<vmem>>, vector<1x4x64xf32>
    tpu.vector_store %arg4[%c0_7, %c0_8, %c0_9], %13 {strides = array<i32>} : memref<1x4x64xf32, #tpu.memory_space<vmem>>, vector<1x4x64xf32>,
    return
  }
  func.func @transform_0(%arg0: i32) -> (i32, i32, i32) {
    %c0_i32 = arith.constant 0 : i32
    %c0_i32_0 = arith.constant 0 : i32
    %c0_i32_1 = arith.constant 0 : i32
    return %arg0, %c0_i32, %c0_i32_0 : i32, i32, i32
  }
  func.func @transform_1(%arg0: i32) -> (i32, i32) {
    %c0_i32 = arith.constant 0 : i32
    %c0_i32_0 = arith.constant 0 : i32
    %c0_i32_1 = arith.constant 0 : i32
    return %c0_i32, %c0_i32_0 : i32, i32
  }
  func.func @transform_2(%arg0: i32) -> (i32, i32) {
    %c0_i32 = arith.constant 0 : i32
    %c0_i32_0 = arith.constant 0 : i32
    %c0_i32_1 = arith.constant 0 : i32
    return %c0_i32, %c0_i32_0 : i32, i32
  }
  func.func @transform_3(%arg0: i32) -> (i32, i32, i32) {
    %c0_i32 = arith.constant 0 : i32
    %c0_i32_0 = arith.constant 0 : i32
    %c0_i32_1 = arith.constant 0 : i32
    return %arg0, %c0_i32, %c0_i32_0 : i32, i32, i32
  }
}

</mosaic_0001>

<llo_original>
// kernel: tpu_custom_call.1
$region0: #{tpu_custom_call.1}
  #allocation0 [shape = 'u32[]', space=smem, size = 0x4, offset = 0x4, fixed_abs, tag = 'smem constant byte address 0x4 - core index']
  #allocation1 [shape = 'u32[144,128]{1,0:T(1,128)}', space=vmem, size = 0x12000, scoped, tag = 'internal scratch']
  %s0 = inlined_call_operand.hbm [shape: f32[8,16,16], index: 0, kind: input, shape index: {}]
  %s1 = inlined_call_operand.vmem [shape: bf16[16,8], index: 1, kind: input, shape index: {}]
  %s2 = inlined_call_operand.vmem [shape: f32[16,8], index: 2, kind: input, shape index: {}]
  %s3 = inlined_call_operand.hbm [shape: f32[2,4,64], index: 3, kind: output, shape index: {}]
  %s4 = sld [smem:[#allocation0]]
  $region49: #{tpu_custom_call.1} parent=0
    _
  %s6 = ssub.s32 1, %s4
  %s7 = scalar_select 0, %s6, %s4
  $region1: #{tpu_custom_call.1} parent=0
    #allocation2 [shape = 'u8[65536]{0}', space=vmem, size = 0x10000, scoped, tag = 'input window, operand 0']
    #allocation3 [shape = 's32[2]{0}', space=sflag, size = 0x8, scoped, tag = 'scoped memory for tpu_custom_call.1']
    #allocation4 [shape = 's32[2]{0}', space=sflag, size = 0x8, scoped, tag = 'scoped memory for tpu_custom_call.1']
    #allocation5 [shape = 'u8[4096]{0}', space=vmem, size = 0x1000, scoped, tag = 'output window, operand 0']
    %8 = vsyncpa [#allocation3], 0
    %s9 = scalar_lea.sflag [#allocation3], 1
    %10 = vsyncpa %s9, 0
    %11 = vsyncpa [#allocation4], 0
    %s12 = scalar_lea.sflag [#allocation4], 1
    %13 = vsyncpa %s12, 0
    loop: start=0, step=1, limit=4
    $region2: #{tpu_custom_call.1} parent=1 // loop_pre_header
      _
    $region3: #{tpu_custom_call.1} parent=1 // loop_header
      %s15 = sphi 0, %s19
      %p16 = scmp.ge.s32.totalorder %s15, 4
      %s25 = sphi 0, %s27
      %s28 = sphi 0, %s25
      %s29 = sphi 0, %s28
      %s45 = sphi 0, %s29
      %s49 = sphi 0, %s49
      %s51 = sphi 0, %s49
      %s52 = sphi 0, %s51
      %s66 = sphi 0, %s52
      %s70 = sphi 0, %s70
      %s72 = sphi 0, %s70
      %s73 = sphi 0, %s72
      %s87 = sphi 0, %s73
      %s93 = sphi 0, %s95
      %s96 = sphi 0, %s93
      %s97 = sphi 0, %s96
      %s113 = sphi 0, %s97
    $region4: #{tpu_custom_call.1} parent=1 // loop_header_branch
      %18 = sbr.rel (%p16) target = $region8
    $region5: #{tpu_custom_call.1} parent=1 // loop_body
      %s20 = ssub.s32 %s15, 1
      %s21 = ssub.s32 %s15, 2
      %s22 = sadd.s32 %s15, 1
      %s23 = ssub.s32 %s15, %s22
      %p24 = scmp.eq.s32.totalorder %s23, 0
      %s26 = sadd.s32 %s25, 1
      %s27 = scalar_select %p24, %s25, %s26
      %p30 = pneg %p24
      %p31 = scmp.eq.s32.totalorder %s15, 1
      %p32 = por %p30, %p31
      %p33 = scmp.ne.s32.totalorder %s25, %s28
      %p34 = scmp.eq.s32.totalorder %s15, 0
      %p35 = por %p33, %p34
      %p36 = scmp.ne.s32.totalorder %s25, %s28
      %p37 = scmp.eq.s32.totalorder %s20, 1
      %p38 = por %p36, %p37
      %p39 = scmp.ne.s32.totalorder %s28, %s29
      %p40 = scmp.eq.s32.totalorder %s20, 0
      %p41 = por %p39, %p40
      %p42 = scmp.ne.s32.totalorder %s28, %s29
      %p43 = scmp.eq.s32.totalorder %s21, 1
      %p44 = por %p42, %p43
      %p46 = scmp.ne.s32.totalorder %s29, %s45
      %p47 = scmp.eq.s32.totalorder %s21, 0
      %p48 = por %p46, %p47
      %s50 = sadd.s32 %s49, 1
      %p53 = scmp.eq.s32.totalorder %s15, 1
      %p54 = scmp.ne.s32.totalorder %s49, %s51
      %p55 = scmp.eq.s32.totalorder %s15, 0
      %p56 = por %p54, %p55
      %p57 = scmp.ne.s32.totalorder %s49, %s51
      %p58 = scmp.eq.s32.totalorder %s20, 1
      %p59 = por %p57, %p58
      %p60 = scmp.ne.s32.totalorder %s51, %s52
      %p61 = scmp.eq.s32.totalorder %s20, 0
      %p62 = por %p60, %p61
      %p63 = scmp.ne.s32.totalorder %s51, %s52
      %p64 = scmp.eq.s32.totalorder %s21, 1
      %p65 = por %p63, %p64
      %p67 = scmp.ne.s32.totalorder %s52, %s66
      %p68 = scmp.eq.s32.totalorder %s21, 0
      %p69 = por %p67, %p68
      %s71 = sadd.s32 %s70, 1
      %p74 = scmp.eq.s32.totalorder %s15, 1
      %p75 = scmp.ne.s32.totalorder %s70, %s72
      %p76 = scmp.eq.s32.totalorder %s15, 0
      %p77 = por %p75, %p76
      %p78 = scmp.ne.s32.totalorder %s70, %s72
      %p79 = scmp.eq.s32.totalorder %s20, 1
      %p80 = por %p78, %p79
      %p81 = scmp.ne.s32.totalorder %s72, %s73
      %p82 = scmp.eq.s32.totalorder %s20, 0
      %p83 = por %p81, %p82
      %p84 = scmp.ne.s32.totalorder %s72, %s73
      %p85 = scmp.eq.s32.totalorder %s21, 1
      %p86 = por %p84, %p85
      %p88 = scmp.ne.s32.totalorder %s73, %s87
      %p89 = scmp.eq.s32.totalorder %s21, 0
      %p90 = por %p88, %p89
      %s91 = ssub.s32 %s15, %s22
      %p92 = scmp.eq.s32.totalorder %s91, 0
      %s94 = sadd.s32 %s93, 1
      %s95 = scalar_select %p92, %s93, %s94
      %p98 = pneg %p92
      %p99 = scmp.eq.s32.totalorder %s15, 1
      %p100 = por %p98, %p99
      %p101 = scmp.ne.s32.totalorder %s93, %s96
      %p102 = scmp.eq.s32.totalorder %s15, 0
      %p103 = por %p101, %p102
      %p104 = scmp.ne.s32.totalorder %s93, %s96
      %p105 = scmp.eq.s32.totalorder %s20, 1
      %p106 = por %p104, %p105
      %p107 = scmp.ne.s32.totalorder %s96, %s97
      %p108 = scmp.eq.s32.totalorder %s20, 0
      %p109 = por %p107, %p108
      %p110 = scmp.ne.s32.totalorder %s96, %s97
      %p111 = scmp.eq.s32.totalorder %s21, 1
      %p112 = por %p110, %p111
      %p114 = scmp.ne.s32.totalorder %s97, %s113
      %p115 = scmp.eq.s32.totalorder %s21, 0
      %p116 = por %p114, %p115
      %p117 = scmp.le.s32.totalorder 1, %s15
      %p118 = scmp.lt.s32.totalorder %s15, 3
      %p119 = pnand %p117, %p118
      %p120 = pneg %p119
      // Predicated region
      $region9: #{tpu_custom_call.1} parent=5 // pred_check
        _
      $region10: #{tpu_custom_call.1} parent=5 // pred_check_branch
        %122 = sbr.rel (%p119) target = $region12
      $region11: #{tpu_custom_call.1} parent=5 // pred_region
        %s123 = ssub.s32 %s15, 1
        // Predicated region
        $region13: #{tpu_custom_call.1} parent=11 // pred_check
          %p124 = pneg %p62
        $region14: #{tpu_custom_call.1} parent=11 // pred_check_branch
          %126 = sbr.rel (%p124) target = $region16
        $region15: #{tpu_custom_call.1} parent=11 // pred_region
          _
        $region16: #{tpu_custom_call.1} parent=11 // pred_fallthru
          _
        // Predicated region
        $region17: #{tpu_custom_call.1} parent=11 // pred_check
          %p127 = pneg %p83
        $region18: #{tpu_custom_call.1} parent=11 // pred_check_branch
          %129 = sbr.rel (%p127) target = $region20
        $region19: #{tpu_custom_call.1} parent=11 // pred_region
          _
        $region20: #{tpu_custom_call.1} parent=11 // pred_fallthru
          _
      $region12: #{tpu_custom_call.1} parent=5 // pred_fallthru
        _
      %p130 = scmp.lt.s32.totalorder %s15, 2
      // Predicated region
      $region21: #{tpu_custom_call.1} parent=5 // pred_check
        %p131 = pneg %p130
      $region22: #{tpu_custom_call.1} parent=5 // pred_check_branch
        %133 = sbr.rel (%p131) target = $region24
      $region23: #{tpu_custom_call.1} parent=5 // pred_region
        // Predicated region
        $region25: #{tpu_custom_call.1} parent=23 // pred_check
          %p134 = pneg %p35
        $region26: #{tpu_custom_call.1} parent=23 // pred_check_branch
          %136 = sbr.rel (%p134) target = $region28
        $region27: #{tpu_custom_call.1} parent=23 // pred_region
          %s137 = sand.u32 %s25, 1
          %s138 = scalar_lea.sflag [#allocation3], %s137
          %s139 = sand.u32 %s25, 1
          %s140 = smul.addr %s139, 64
          %s141 = scalar_lea.vmem [#allocation2], %s140
          %s142 = smul.u32 4, %s15
          %s144 = ssub.s32 1024, 1024
          %145 = vsyncadd %s138, %s144
          %s146 = smul.addr %s142, 2
          %s147 = smul.addr %s146, 128
          %s148 = scalar_lea.hbm %s0, %s147
          %s149 = sshll.u32 %s141, 4
          %s150 = int_to_ptr.vmem [resolvable:$true] %s149
          %155 = dma.hbm_to_vmem [thread:$0]  %s148, 1024, %s150, %s138, 128, 128, 8
        $region28: #{tpu_custom_call.1} parent=23 // pred_fallthru
          _
      $region24: #{tpu_custom_call.1} parent=5 // pred_fallthru
        _
      %p156 = scmp.le.s32.totalorder 1, %s15
      %p157 = scmp.lt.s32.totalorder %s15, 3
      %p158 = pnand %p156, %p157
      %p159 = pneg %p158
      // Predicated region
      $region29: #{tpu_custom_call.1} parent=5 // pred_check
        _
      $region30: #{tpu_custom_call.1} parent=5 // pred_check_branch
        %161 = sbr.rel (%p158) target = $region32
      $region31: #{tpu_custom_call.1} parent=5 // pred_region
        %s162 = ssub.s32 %s15, 1
        %s163 = sand.u32 %s28, 1
        %s164 = scalar_lea.sflag [#allocation3], %s163
        %s165 = sand.u32 %s28, 1
        %s166 = smul.addr %s165, 64
        %s167 = scalar_lea.vmem [#allocation2], %s166
        // Predicated region
        $region33: #{tpu_custom_call.1} parent=31 // pred_check
          %p168 = pneg %p41
        $region34: #{tpu_custom_call.1} parent=31 // pred_check_branch
          %170 = sbr.rel (%p168) target = $region36
        $region35: #{tpu_custom_call.1} parent=31 // pred_region
          %171 = dma.done %s164, 1024
        $region36: #{tpu_custom_call.1} parent=31 // pred_fallthru
          _
        %s172 = sand.u32 %s28, 1
        %s173 = scalar_lea.sflag [#allocation3], %s172
        %s174 = sand.u32 %s28, 1
        %s175 = smul.addr %s174, 64
        %s176 = scalar_lea.vmem [#allocation2], %s175
        %p177 = pneg %p41
        %p178 = pneg %p38
        %p179 = pneg %p62
        %p180 = pneg %p59
        %p181 = pneg %p83
        %p182 = pneg %p80
        %p183 = pneg %p109
        %p184 = pneg %p106
        %s185 = sand.u32 %s96, 1
        %s186 = scalar_lea.sflag [#allocation4], %s185
        %s187 = sand.u32 %s96, 1
        %s188 = smul.addr %s187, 4
        %s189 = scalar_lea.vmem [#allocation5], %s188
        %s190 = smul.u32 4, %s20
        %v192 = vld [vmem:[%s167] sm:$0xff]
        %v193 = vld [vmem:[%s167 + $0x8] sm:$0xff]
        %v194 = vld [vmem:[%s167 + $0x10] sm:$0xff]
        %v195 = vld [vmem:[%s167 + $0x18] sm:$0xff]
        %v196 = vld [vmem:[%s167 + $0x20] sm:$0xff]
        %v197 = vld [vmem:[%s167 + $0x28] sm:$0xff]
        %v198 = vld [vmem:[%s167 + $0x30] sm:$0xff]
        %v199 = vld [vmem:[%s167 + $0x38] sm:$0xff]
        %v200 = vpack.c.bf16 %v193, %v192
        %v201 = vpack.c.bf16 %v195, %v194
        %v202 = vpack.c.bf16 %v197, %v196
        %v203 = vpack.c.bf16 %v199, %v198
        %v204 = vld [vmem:[%s1] sm:$0xf]
        %v205 = vld [vmem:[%s1 + $0x4] sm:$0xf]
        %v208 = vunpack.c.l.b16 %v204
        %v209 = vunpack.c.l.b16 %v205
        %v210 = vpack.c.b16 %v209, %v208
        %vm212 = vcmask 130048
        %v214 = vsel %vm212, %v200, 0
        %v217 = vsel %vm212, %v201, 0
        %v220 = vsel %vm212, %v202, 0
        %v223 = vsel %vm212, %v203, 0
        %225 = vmatprep.subr.bf16.mxu0 0
        %226 = vmatpush1.bf16.msra.mxu0 %v210
        %227 = vmatprep.subr.bf16.mxu0 0
        %228 = vmatpush1.bf16.msra.mxu0 0
        %229 = vmatprep.subr.bf16.mxu0 0
        %230 = vmatpush1.bf16.msra.mxu0 0
        %231 = vmatprep.subr.bf16.mxu0 0
        %232 = vmatpush1.bf16.msra.mxu0 0
        %233 = vmatprep.subr.bf16.mxu0 0
        %234 = vmatpush1.bf16.msra.mxu0 0
        %235 = vmatprep.subr.bf16.mxu0 0
        %236 = vmatpush1.bf16.msra.mxu0 0
        %237 = vmatprep.subr.bf16.mxu0 0
        %238 = vmatpush1.bf16.msra.mxu0 0
        %239 = vmatprep.subr.bf16.mxu0 0
        %240 = vmatpush1.bf16.msra.mxu0 0
        %241 = vmatprep.subr.bf16.mxu0 0
        %242 = vmatpush1.bf16.msra.mxu0 0
        %243 = vmatprep.subr.bf16.mxu0 0
        %244 = vmatpush1.bf16.msra.mxu0 0
        %245 = vmatprep.subr.bf16.mxu0 0
        %246 = vmatpush1.bf16.msra.mxu0 0
        %247 = vmatprep.subr.bf16.mxu0 0
        %248 = vmatpush1.bf16.msra.mxu0 0
        %249 = vmatprep.subr.bf16.mxu0 0
        %250 = vmatpush1.bf16.msra.mxu0 0
        %251 = vmatprep.subr.bf16.mxu0 0
        %252 = vmatpush1.bf16.msra.mxu0 0
        %253 = vmatprep.subr.bf16.mxu0 0
        %254 = vmatpush1.bf16.msra.mxu0 0
        %255 = vmatprep.subr.bf16.mxu0 0
        %256 = vmatpush1.bf16.msra.mxu0 0
        %257 = vmatprep.mubr.bf16.mxu0 0
        %258 = vmatmul.mubr.bf16.gmra.mrb[0].mxu0 %v214
        %v259 = vpop.f32.mrb[0].mxu0
        %v260 = vadd.f32 0.0, %v259
        %v261 = vpop.f32.mrb[0].mxu0
        %v262 = vpop.f32.mrb[0].mxu0
        %v263 = vadd.f32 0.0, %v262
        %v264 = vpop.f32.mrb[0].mxu0
        %265 = vmatprep.mubr.bf16.mxu0 0
        %266 = vmatmul.mubr.bf16.gmra.mrb[0].mxu0 %v217
        %v267 = vpop.f32.mrb[0].mxu0
        %v268 = vadd.f32 0.0, %v267
        %v269 = vpop.f32.mrb[0].mxu0
        %v270 = vpop.f32.mrb[0].mxu0
        %v271 = vadd.f32 0.0, %v270
        %v272 = vpop.f32.mrb[0].mxu0
        %273 = vmatprep.mubr.bf16.mxu0 0
        %274 = vmatmul.mubr.bf16.gmra.mrb[0].mxu0 %v220
        %v275 = vpop.f32.mrb[0].mxu0
        %v276 = vadd.f32 0.0, %v275
        %v277 = vpop.f32.mrb[0].mxu0
        %v278 = vpop.f32.mrb[0].mxu0
        %v279 = vadd.f32 0.0, %v278
        %v280 = vpop.f32.mrb[0].mxu0
        %281 = vmatprep.mubr.bf16.mxu0 0
        %282 = vmatmul.mubr.bf16.gmra.mrb[0].mxu0 %v223
        %v283 = vpop.f32.mrb[0].mxu0
        %v284 = vadd.f32 0.0, %v283
        %v285 = vpop.f32.mrb[0].mxu0
        %v286 = vpop.f32.mrb[0].mxu0
        %v287 = vadd.f32 0.0, %v286
        %v288 = vpop.f32.mrb[0].mxu0
        %289 = vdwg.mxu0
        %290 = vxpose.xlu0.b32.start [1/16] %v260, 128
        %291 = vxpose.xlu0.b32.cont [2/16] %v263, 128
        %292 = vxpose.xlu0.b32.cont [3/16] 0.0, 128
        %293 = vxpose.xlu0.b32.cont [4/16] 0.0, 128
        %294 = vxpose.xlu0.b32.cont [5/16] 0.0, 128
        %295 = vxpose.xlu0.b32.cont [6/16] 0.0, 128
        %296 = vxpose.xlu0.b32.cont [7/16] 0.0, 128
        %297 = vxpose.xlu0.b32.cont [8/16] 0.0, 128
        %298 = vxpose.xlu0.b32.cont [9/16] 0.0, 128
        %299 = vxpose.xlu0.b32.cont [10/16] 0.0, 128
        %300 = vxpose.xlu0.b32.cont [11/16] 0.0, 128
        %301 = vxpose.xlu0.b32.cont [12/16] 0.0, 128
        %302 = vxpose.xlu0.b32.cont [13/16] 0.0, 128
        %303 = vxpose.xlu0.b32.cont [14/16] 0.0, 128
        %304 = vxpose.xlu0.b32.cont [15/16] 0.0, 128
        %305 = vxpose.xlu0.b32.end [16/16] 0.0, 128
        %v306 = vpop.trf.xlu0
        %v307 = vpop.trf.xlu0
        %v308 = vpop.trf.xlu0
        %v309 = vpop.trf.xlu0
        %v310 = vpop.trf.xlu0
        %v311 = vpop.trf.xlu0
        %v312 = vpop.trf.xlu0
        %v313 = vpop.trf.xlu0
        %v314 = vpop.trf.xlu0
        %v315 = vpop.trf.xlu0
        %v316 = vpop.trf.xlu0
        %v317 = vpop.trf.xlu0
        %v318 = vpop.trf.xlu0
        %v319 = vpop.trf.xlu0
        %v320 = vpop.trf.xlu0
        %v321 = vpop.trf.xlu0
        %322 = vxpose.xlu0.b32.start [1/16] %v268, 128
        %323 = vxpose.xlu0.b32.cont [2/16] %v271, 128
        %324 = vxpose.xlu0.b32.cont [3/16] 0.0, 128
        %325 = vxpose.xlu0.b32.cont [4/16] 0.0, 128
        %326 = vxpose.xlu0.b32.cont [5/16] 0.0, 128
        %327 = vxpose.xlu0.b32.cont [6/16] 0.0, 128
        %328 = vxpose.xlu0.b32.cont [7/16] 0.0, 128
        %329 = vxpose.xlu0.b32.cont [8/16] 0.0, 128
        %330 = vxpose.xlu0.b32.cont [9/16] 0.0, 128
        %331 = vxpose.xlu0.b32.cont [10/16] 0.0, 128
        %332 = vxpose.xlu0.b32.cont [11/16] 0.0, 128
        %333 = vxpose.xlu0.b32.cont [12/16] 0.0, 128
        %334 = vxpose.xlu0.b32.cont [13/16] 0.0, 128
        %335 = vxpose.xlu0.b32.cont [14/16] 0.0, 128
        %336 = vxpose.xlu0.b32.cont [15/16] 0.0, 128
        %337 = vxpose.xlu0.b32.end [16/16] 0.0, 128
        %v338 = vpop.trf.xlu0
        %v339 = vpop.trf.xlu0
        %v340 = vpop.trf.xlu0
        %v341 = vpop.trf.xlu0
        %v342 = vpop.trf.xlu0
        %v343 = vpop.trf.xlu0
        %v344 = vpop.trf.xlu0
        %v345 = vpop.trf.xlu0
        %v346 = vpop.trf.xlu0
        %v347 = vpop.trf.xlu0
        %v348 = vpop.trf.xlu0
        %v349 = vpop.trf.xlu0
        %v350 = vpop.trf.xlu0
        %v351 = vpop.trf.xlu0
        %v352 = vpop.trf.xlu0
        %v353 = vpop.trf.xlu0
        %354 = vxpose.xlu0.b32.start [1/16] %v276, 128
        %355 = vxpose.xlu0.b32.cont [2/16] %v279, 128
        %356 = vxpose.xlu0.b32.cont [3/16] 0.0, 128
        %357 = vxpose.xlu0.b32.cont [4/16] 0.0, 128
        %358 = vxpose.xlu0.b32.cont [5/16] 0.0, 128
        %359 = vxpose.xlu0.b32.cont [6/16] 0.0, 128
        %360 = vxpose.xlu0.b32.cont [7/16] 0.0, 128
        %361 = vxpose.xlu0.b32.cont [8/16] 0.0, 128
        %362 = vxpose.xlu0.b32.cont [9/16] 0.0, 128
        %363 = vxpose.xlu0.b32.cont [10/16] 0.0, 128
        %364 = vxpose.xlu0.b32.cont [11/16] 0.0, 128
        %365 = vxpose.xlu0.b32.cont [12/16] 0.0, 128
        %366 = vxpose.xlu0.b32.cont [13/16] 0.0, 128
        %367 = vxpose.xlu0.b32.cont [14/16] 0.0, 128
        %368 = vxpose.xlu0.b32.cont [15/16] 0.0, 128
        %369 = vxpose.xlu0.b32.end [16/16] 0.0, 128
        %v370 = vpop.trf.xlu0
        %v371 = vpop.trf.xlu0
        %v372 = vpop.trf.xlu0
        %v373 = vpop.trf.xlu0
        %v374 = vpop.trf.xlu0
        %v375 = vpop.trf.xlu0
        %v376 = vpop.trf.xlu0
        %v377 = vpop.trf.xlu0
        %v378 = vpop.trf.xlu0
        %v379 = vpop.trf.xlu0
        %v380 = vpop.trf.xlu0
        %v381 = vpop.trf.xlu0
        %v382 = vpop.trf.xlu0
        %v383 = vpop.trf.xlu0
        %v384 = vpop.trf.xlu0
        %v385 = vpop.trf.xlu0
        %386 = vxpose.xlu0.b32.start [1/16] %v284, 128
        %387 = vxpose.xlu0.b32.cont [2/16] %v287, 128
        %388 = vxpose.xlu0.b32.cont [3/16] 0.0, 128
        %389 = vxpose.xlu0.b32.cont [4/16] 0.0, 128
        %390 = vxpose.xlu0.b32.cont [5/16] 0.0, 128
        %391 = vxpose.xlu0.b32.cont [6/16] 0.0, 128
        %392 = vxpose.xlu0.b32.cont [7/16] 0.0, 128
        %393 = vxpose.xlu0.b32.cont [8/16] 0.0, 128
        %394 = vxpose.xlu0.b32.cont [9/16] 0.0, 128
        %395 = vxpose.xlu0.b32.cont [10/16] 0.0, 128
        %396 = vxpose.xlu0.b32.cont [11/16] 0.0, 128
        %397 = vxpose.xlu0.b32.cont [12/16] 0.0, 128
        %398 = vxpose.xlu0.b32.cont [13/16] 0.0, 128
        %399 = vxpose.xlu0.b32.cont [14/16] 0.0, 128
        %400 = vxpose.xlu0.b32.cont [15/16] 0.0, 128
        %401 = vxpose.xlu0.b32.end [16/16] 0.0, 128
        %v402 = vpop.trf.xlu0
        %v403 = vpop.trf.xlu0
        %v404 = vpop.trf.xlu0
        %v405 = vpop.trf.xlu0
        %v406 = vpop.trf.xlu0
        %v407 = vpop.trf.xlu0
        %v408 = vpop.trf.xlu0
        %v409 = vpop.trf.xlu0
        %v410 = vpop.trf.xlu0
        %v411 = vpop.trf.xlu0
        %v412 = vpop.trf.xlu0
        %v413 = vpop.trf.xlu0
        %v414 = vpop.trf.xlu0
        %v415 = vpop.trf.xlu0
        %v416 = vpop.trf.xlu0
        %v417 = vpop.trf.xlu0
        %v418 = vld [vmem:[%s2] sm:$0xff]
        %v419 = vld [vmem:[%s2 + $0x8] sm:$0xff]
        %v421 = vsel %vm212, %v306, 0
        %v424 = vsel %vm212, %v338, 0
        %v427 = vsel %vm212, %v370, 0
        %v430 = vsel %vm212, %v402, 0
        %432 = vmatprep.subr.mxu0 0.0
        %433 = vmatpush1.msra.mxu0 %v418
        %434 = vmatprep.subr.mxu0 0.0
        %435 = vmatpush1.msra.mxu0 %v419
        %436 = vmatprep.subr.mxu0 0.0
        %437 = vmatpush1.msra.mxu0 0.0
        %438 = vmatprep.subr.mxu0 0.0
        %439 = vmatpush1.msra.mxu0 0.0
        %440 = vmatprep.subr.mxu0 0.0
        %441 = vmatpush1.msra.mxu0 0.0
        %442 = vmatprep.subr.mxu0 0.0
        %443 = vmatpush1.msra.mxu0 0.0
        %444 = vmatprep.subr.mxu0 0.0
        %445 = vmatpush1.msra.mxu0 0.0
        %446 = vmatprep.subr.mxu0 0.0
        %447 = vmatpush1.msra.mxu0 0.0
        %448 = vmatprep.subr.mxu0 0.0
        %449 = vmatpush1.msra.mxu0 0.0
        %450 = vmatprep.subr.mxu0 0.0
        %451 = vmatpush1.msra.mxu0 0.0
        %452 = vmatprep.subr.mxu0 0.0
        %453 = vmatpush1.msra.mxu0 0.0
        %454 = vmatprep.subr.mxu0 0.0
        %455 = vmatpush1.msra.mxu0 0.0
        %456 = vmatprep.subr.mxu0 0.0
        %457 = vmatpush1.msra.mxu0 0.0
        %458 = vmatprep.subr.mxu0 0.0
        %459 = vmatpush1.msra.mxu0 0.0
        %460 = vmatprep.subr.mxu0 0.0
        %461 = vmatpush1.msra.mxu0 0.0
        %462 = vmatprep.subr.mxu0 0.0
        %463 = vmatpush1.msra.mxu0 0.0
        %464 = vmatprep.subr.mxu0 0.0
        %465 = vmatpush1.msra.mxu0 0.0
        %466 = vmatprep.subr.mxu0 0.0
        %467 = vmatpush1.msra.mxu0 0.0
        %468 = vmatprep.subr.mxu0 0.0
        %469 = vmatpush1.msra.mxu0 0.0
        %470 = vmatprep.subr.mxu0 0.0
        %471 = vmatpush1.msra.mxu0 0.0
        %472 = vmatprep.subr.mxu0 0.0
        %473 = vmatpush1.msra.mxu0 0.0
        %474 = vmatprep.subr.mxu0 0.0
        %475 = vmatpush1.msra.mxu0 0.0
        %476 = vmatprep.subr.mxu0 0.0
        %477 = vmatpush1.msra.mxu0 0.0
        %478 = vmatprep.subr.mxu0 0.0
        %479 = vmatpush1.msra.mxu0 0.0
        %480 = vmatprep.subr.mxu0 0.0
        %481 = vmatpush1.msra.mxu0 0.0
        %482 = vmatprep.subr.mxu0 0.0
        %483 = vmatpush1.msra.mxu0 0.0
        %484 = vmatprep.subr.mxu0 0.0
        %485 = vmatpush1.msra.mxu0 0.0
        %486 = vmatprep.subr.mxu0 0.0
        %487 = vmatpush1.msra.mxu0 0.0
        %488 = vmatprep.subr.mxu0 0.0
        %489 = vmatpush1.msra.mxu0 0.0
        %490 = vmatprep.subr.mxu0 0.0
        %491 = vmatpush1.msra.mxu0 0.0
        %492 = vmatprep.subr.mxu0 0.0
        %493 = vmatpush1.msra.mxu0 0.0
        %494 = vmatprep.subr.mxu0 0.0
        %495 = vmatpush1.msra.mxu0 0.0
        %496 = vmatprep.mubr.f32.mxu0 0.0
        %497 = vmatmul.mubr.f32.gmra.mrb[0].mxu0 %v421
        %v498 = vpop.f32.mrb[0].mxu0
        %v499 = vadd.f32 0.0, %v498
        %v500 = vpop.f32.mrb[0].mxu0
        %501 = vmatprep.mubr.f32.mxu0 0.0
        %502 = vmatmul.mubr.f32.gmra.mrb[0].mxu0 %v424
        %v503 = vpop.f32.mrb[0].mxu0
        %v504 = vadd.f32 0.0, %v503
        %v505 = vpop.f32.mrb[0].mxu0
        %506 = vmatprep.mubr.f32.mxu0 0.0
        %507 = vmatmul.mubr.f32.gmra.mrb[0].mxu0 %v427
        %v508 = vpop.f32.mrb[0].mxu0
        %v509 = vadd.f32 0.0, %v508
        %v510 = vpop.f32.mrb[0].mxu0
        %511 = vmatprep.mubr.f32.mxu0 0.0
        %512 = vmatmul.mubr.f32.gmra.mrb[0].mxu0 %v430
        %v513 = vpop.f32.mrb[0].mxu0
        %v514 = vadd.f32 0.0, %v513
        %v515 = vpop.f32.mrb[0].mxu0
        %516 = vdwg.mxu0
        %517 = vxpose.xlu0.b32.start [1/16] %v499, 128
        %518 = vxpose.xlu0.b32.cont [2/16] 0.0, 128
        %519 = vxpose.xlu0.b32.cont [3/16] 0.0, 128
        %520 = vxpose.xlu0.b32.cont [4/16] 0.0, 128
        %521 = vxpose.xlu0.b32.cont [5/16] 0.0, 128
        %522 = vxpose.xlu0.b32.cont [6/16] 0.0, 128
        %523 = vxpose.xlu0.b32.cont [7/16] 0.0, 128
        %524 = vxpose.xlu0.b32.cont [8/16] 0.0, 128
        %525 = vxpose.xlu0.b32.cont [9/16] 0.0, 128
        %526 = vxpose.xlu0.b32.cont [10/16] 0.0, 128
        %527 = vxpose.xlu0.b32.cont [11/16] 0.0, 128
        %528 = vxpose.xlu0.b32.cont [12/16] 0.0, 128
        %529 = vxpose.xlu0.b32.cont [13/16] 0.0, 128
        %530 = vxpose.xlu0.b32.cont [14/16] 0.0, 128
        %531 = vxpose.xlu0.b32.cont [15/16] 0.0, 128
        %532 = vxpose.xlu0.b32.end [16/16] 0.0, 128
        %v533 = vpop.trf.xlu0
        %v534 = vpop.trf.xlu0
        %v535 = vpop.trf.xlu0
        %v536 = vpop.trf.xlu0
        %v537 = vpop.trf.xlu0
        %v538 = vpop.trf.xlu0
        %v539 = vpop.trf.xlu0
        %v540 = vpop.trf.xlu0
        %v541 = vpop.trf.xlu0
        %v542 = vpop.trf.xlu0
        %v543 = vpop.trf.xlu0
        %v544 = vpop.trf.xlu0
        %v545 = vpop.trf.xlu0
        %v546 = vpop.trf.xlu0
        %v547 = vpop.trf.xlu0
        %v548 = vpop.trf.xlu0
        %549 = vxpose.xlu0.b32.start [1/16] %v504, 128
        %550 = vxpose.xlu0.b32.cont [2/16] 0.0, 128
        %551 = vxpose.xlu0.b32.cont [3/16] 0.0, 128
        %552 = vxpose.xlu0.b32.cont [4/16] 0.0, 128
        %553 = vxpose.xlu0.b32.cont [5/16] 0.0, 128
        %554 = vxpose.xlu0.b32.cont [6/16] 0.0, 128
        %555 = vxpose.xlu0.b32.cont [7/16] 0.0, 128
        %556 = vxpose.xlu0.b32.cont [8/16] 0.0, 128
        %557 = vxpose.xlu0.b32.cont [9/16] 0.0, 128
        %558 = vxpose.xlu0.b32.cont [10/16] 0.0, 128
        %559 = vxpose.xlu0.b32.cont [11/16] 0.0, 128
        %560 = vxpose.xlu0.b32.cont [12/16] 0.0, 128
        %561 = vxpose.xlu0.b32.cont [13/16] 0.0, 128
        %562 = vxpose.xlu0.b32.cont [14/16] 0.0, 128
        %563 = vxpose.xlu0.b32.cont [15/16] 0.0, 128
        %564 = vxpose.xlu0.b32.end [16/16] 0.0, 128
        %v565 = vpop.trf.xlu0
        %v566 = vpop.trf.xlu0
        %v567 = vpop.trf.xlu0
        %v568 = vpop.trf.xlu0
        %v569 = vpop.trf.xlu0
        %v570 = vpop.trf.xlu0
        %v571 = vpop.trf.xlu0
        %v572 = vpop.trf.xlu0
        %v573 = vpop.trf.xlu0
        %v574 = vpop.trf.xlu0
        %v575 = vpop.trf.xlu0
        %v576 = vpop.trf.xlu0
        %v577 = vpop.trf.xlu0
        %v578 = vpop.trf.xlu0
        %v579 = vpop.trf.xlu0
        %v580 = vpop.trf.xlu0
        %581 = vxpose.xlu0.b32.start [1/16] %v509, 128
        %582 = vxpose.xlu0.b32.cont [2/16] 0.0, 128
        %583 = vxpose.xlu0.b32.cont [3/16] 0.0, 128
        %584 = vxpose.xlu0.b32.cont [4/16] 0.0, 128
        %585 = vxpose.xlu0.b32.cont [5/16] 0.0, 128
        %586 = vxpose.xlu0.b32.cont [6/16] 0.0, 128
        %587 = vxpose.xlu0.b32.cont [7/16] 0.0, 128
        %588 = vxpose.xlu0.b32.cont [8/16] 0.0, 128
        %589 = vxpose.xlu0.b32.cont [9/16] 0.0, 128
        %590 = vxpose.xlu0.b32.cont [10/16] 0.0, 128
        %591 = vxpose.xlu0.b32.cont [11/16] 0.0, 128
        %592 = vxpose.xlu0.b32.cont [12/16] 0.0, 128
        %593 = vxpose.xlu0.b32.cont [13/16] 0.0, 128
        %594 = vxpose.xlu0.b32.cont [14/16] 0.0, 128
        %595 = vxpose.xlu0.b32.cont [15/16] 0.0, 128
        %596 = vxpose.xlu0.b32.end [16/16] 0.0, 128
        %v597 = vpop.trf.xlu0
        %v598 = vpop.trf.xlu0
        %v599 = vpop.trf.xlu0
        %v600 = vpop.trf.xlu0
        %v601 = vpop.trf.xlu0
        %v602 = vpop.trf.xlu0
        %v603 = vpop.trf.xlu0
        %v604 = vpop.trf.xlu0
        %v605 = vpop.trf.xlu0
        %v606 = vpop.trf.xlu0
        %v607 = vpop.trf.xlu0
        %v608 = vpop.trf.xlu0
        %v609 = vpop.trf.xlu0
        %v610 = vpop.trf.xlu0
        %v611 = vpop.trf.xlu0
        %v612 = vpop.trf.xlu0
        %613 = vxpose.xlu0.b32.start [1/16] %v514, 128
        %614 = vxpose.xlu0.b32.cont [2/16] 0.0, 128
        %615 = vxpose.xlu0.b32.cont [3/16] 0.0, 128
        %616 = vxpose.xlu0.b32.cont [4/16] 0.0, 128
        %617 = vxpose.xlu0.b32.cont [5/16] 0.0, 128
        %618 = vxpose.xlu0.b32.cont [6/16] 0.0, 128
        %619 = vxpose.xlu0.b32.cont [7/16] 0.0, 128
        %620 = vxpose.xlu0.b32.cont [8/16] 0.0, 128
        %621 = vxpose.xlu0.b32.cont [9/16] 0.0, 128
        %622 = vxpose.xlu0.b32.cont [10/16] 0.0, 128
        %623 = vxpose.xlu0.b32.cont [11/16] 0.0, 128
        %624 = vxpose.xlu0.b32.cont [12/16] 0.0, 128
        %625 = vxpose.xlu0.b32.cont [13/16] 0.0, 128
        %626 = vxpose.xlu0.b32.cont [14/16] 0.0, 128
        %627 = vxpose.xlu0.b32.cont [15/16] 0.0, 128
        %628 = vxpose.xlu0.b32.end [16/16] 0.0, 128
        %v629 = vpop.trf.xlu0
        %v630 = vpop.trf.xlu0
        %v631 = vpop.trf.xlu0
        %v632 = vpop.trf.xlu0
        %v633 = vpop.trf.xlu0
        %v634 = vpop.trf.xlu0
        %v635 = vpop.trf.xlu0
        %v636 = vpop.trf.xlu0
        %v637 = vpop.trf.xlu0
        %v638 = vpop.trf.xlu0
        %v639 = vpop.trf.xlu0
        %v640 = vpop.trf.xlu0
        %v641 = vpop.trf.xlu0
        %v642 = vpop.trf.xlu0
        %v643 = vpop.trf.xlu0
        %v644 = vpop.trf.xlu0
        %v645 = vcombine.low %v533, %v597
        %v646 = vcombine.high %v533, %v597
        %v648 = vunpack.c.l.s4 1983009808
        %v649 = vunpack.c.0.s8 %v648
        %v650 = vlaneseq
        %v651 = vshrl.u32 %v650, 7
        %v652 = vsub.s32 %v649, %v651
        %v653 = vrot.slane %v645, %v652
        %v655 = vunpack.c.l.s4 1983009808
        %v656 = vunpack.c.0.s8 %v655
        %v657 = vlaneseq
        %v658 = vshrl.u32 %v657, 7
        %v659 = vsub.s32 %v656, %v658
        %v660 = vrot.slane %v646, %v659
        %v661 = vcombine.low %v565, %v629
        %v662 = vcombine.high %v565, %v629
        %v664 = vunpack.c.l.s4 1983009808
        %v665 = vunpack.c.0.s8 %v664
        %v666 = vlaneseq
        %v667 = vshrl.u32 %v666, 7
        %v668 = vsub.s32 %v665, %v667
        %v669 = vrot.slane %v661, %v668
        %v671 = vunpack.c.l.s4 1983009808
        %v672 = vunpack.c.0.s8 %v671
        %v673 = vlaneseq
        %v674 = vshrl.u32 %v673, 7
        %v675 = vsub.s32 %v672, %v674
        %v676 = vrot.slane %v662, %v675
        %v677 = vcombine.low %v653, %v669
        %v678 = vcombine.high %v653, %v669
        %v680 = vunpack.c.l.s4 1934713408
        %v681 = vunpack.c.0.s8 %v680
        %v682 = vlaneseq
        %v683 = vshrl.u32 %v682, 7
        %v684 = vsub.s32 %v681, %v683
        %v685 = vrot.slane %v677, %v684
        %v687 = vunpack.c.l.s4 1934713408
        %v688 = vunpack.c.0.s8 %v687
        %v689 = vlaneseq
        %v690 = vshrl.u32 %v689, 7
        %v691 = vsub.s32 %v688, %v690
        %v692 = vrot.slane %v678, %v691
        %v693 = vcombine.low %v660, %v676
        %v694 = vcombine.high %v660, %v676
        %v696 = vunpack.c.l.s4 1934713408
        %v697 = vunpack.c.0.s8 %v696
        %v698 = vlaneseq
        %v699 = vshrl.u32 %v698, 7
        %v700 = vsub.s32 %v697, %v699
        %v701 = vrot.slane %v693, %v700
        %v703 = vunpack.c.l.s4 1934713408
        %v704 = vunpack.c.0.s8 %v703
        %v705 = vlaneseq
        %v706 = vshrl.u32 %v705, 7
        %v707 = vsub.s32 %v704, %v706
        %v708 = vrot.slane %v694, %v707
        %v709 = vcombine.high %v685, 0.0
        %v710 = vcombine.high %v692, 0.0
        %v711 = vcombine.high %v701, 0.0
        %v712 = vcombine.high %v708, 0.0
        %714 = vrot.lane.b32.xlu0 %v709, 8
        %v715 = vpop.permute.xlu0 %714
        %718 = vrot.lane.b32.xlu0 %v692, 16
        %v719 = vpop.permute.xlu0 %718
        %722 = vrot.lane.b32.xlu0 %v710, 24
        %v723 = vpop.permute.xlu0 %722
        %726 = vrot.lane.b32.xlu0 %v701, 32
        %v727 = vpop.permute.xlu0 %726
        %730 = vrot.lane.b32.xlu0 %v711, 40
        %v731 = vpop.permute.xlu0 %730
        %734 = vrot.lane.b32.xlu0 %v708, 48
        %v735 = vpop.permute.xlu0 %734
        %738 = vrot.lane.b32.xlu0 %v712, 56
        %v739 = vpop.permute.xlu0 %738
        %vm741 = vcmask 64512
        %v742 = vsel %vm741, %v685, %v715
        %v743 = vsel %vm212, %v742, %v719
        %vm744 = vcmask 195584
        %v745 = vsel %vm744, %v743, %v723
        %vm746 = vcmask 261120
        %v747 = vsel %vm746, %v745, %v727
        %vm748 = vcmask 326656
        %v749 = vsel %vm748, %v747, %v731
        %vm750 = vcmask 392192
        %v751 = vsel %vm750, %v749, %v735
        %vm752 = vcmask 457728
        %v753 = vsel %vm752, %v751, %v739
        %vm754 = vcmask 519168
        %755 = vst.msk [vmem:[%s189] sm:$0xf] %vm754, %v753
        %s756 = sand.u32 %s96, 1
        %s757 = scalar_lea.sflag [#allocation4], %s756
        %s758 = sand.u32 %s96, 1
        %s759 = smul.addr %s758, 4
        %s760 = scalar_lea.vmem [#allocation5], %s759
        // Predicated region
        $region37: #{tpu_custom_call.1} parent=31 // pred_check
          %p761 = pneg %p106
        $region38: #{tpu_custom_call.1} parent=31 // pred_check_branch
          %763 = sbr.rel (%p761) target = $region40
        $region39: #{tpu_custom_call.1} parent=31 // pred_region
          %s765 = ssub.s32 64, 64
          %766 = vsyncadd %s757, %s765
          %s767 = smul.addr %s20, 64
          %s768 = scalar_lea.hbm %s3, %s767
          %s770 = sshll.u32 %s760, 4
          %s771 = int_to_ptr.vmem [resolvable:$true] %s770
          %773 = dma.vmem_to_hbm [thread:$0]  %s771, 64, %s768, %s757
        $region40: #{tpu_custom_call.1} parent=31 // pred_fallthru
          _
      $region32: #{tpu_custom_call.1} parent=5 // pred_fallthru
        _
      %p774 = scmp.le.s32.totalorder 2, %s15
      // Predicated region
      $region41: #{tpu_custom_call.1} parent=5 // pred_check
        %p775 = pneg %p774
      $region42: #{tpu_custom_call.1} parent=5 // pred_check_branch
        %777 = sbr.rel (%p775) target = $region44
      $region43: #{tpu_custom_call.1} parent=5 // pred_region
        %s778 = ssub.s32 %s15, 2
        // Predicated region
        $region45: #{tpu_custom_call.1} parent=43 // pred_check
          %p779 = pneg %p112
        $region46: #{tpu_custom_call.1} parent=43 // pred_check_branch
          %781 = sbr.rel (%p779) target = $region48
        $region47: #{tpu_custom_call.1} parent=43 // pred_region
          %s782 = sand.u32 %s97, 1
          %s783 = scalar_lea.sflag [#allocation4], %s782
          %s784 = sand.u32 %s97, 1
          %s785 = smul.addr %s784, 4
          %s786 = scalar_lea.vmem [#allocation5], %s785
          %787 = dma.done %s783, 64
        $region48: #{tpu_custom_call.1} parent=43 // pred_fallthru
          _
      $region44: #{tpu_custom_call.1} parent=5 // pred_fallthru
        _
    $region6: #{tpu_custom_call.1} parent=1 // loop_footer
      %s19 = sadd.s32 1, %s15
    $region7: #{tpu_custom_call.1} parent=1 // loop_footer_branch
      %14 = sbr.rel target = $region3
    $region8: #{tpu_custom_call.1} parent=1 // loop_exit
      _
    %788 = vsyncpa [#allocation3], 1
    %s789 = scalar_lea.sflag [#allocation3], 1
    %790 = vsyncpa %s789, 1
    %791 = vsyncpa [#allocation4], 1
    %s792 = scalar_lea.sflag [#allocation4], 1
    %793 = vsyncpa %s792, 1

</llo_original>
